<compile_context>
chip_gen: v7x
topology: tpu7x:2x2x1
jax: 0.10.0
libtpu: 0.0.40
codegen_flags: <defaults>
</compile_context>

<pallas_src>
import jax
import jax.numpy as jnp
from jax.experimental import pallas as pl
from jax.experimental.pallas import tpu as pltpu


def _round_up(x, m):
    return (x + m - 1) // m * m


def gmf_kernel(uidx_ref, iidx_ref, uembT_ref, iembT_ref, w_ref, b_ref, out_ref):
    # uidx/iidx : (1, tile) int32  (VMEM)
    # uembT/iembT: (D, V)  io_dtype (VMEM, resident across the grid)
    # w         : (D, 1)  f32      (VMEM, resident)
    # b         : (1,)    f32      (SMEM scalar)
    # out       : (1, tile) f32    (lane-dense store)
    tile = uidx_ref.shape[1]
    n_users = uembT_ref.shape[1]
    n_items = iembT_ref.shape[1]

    uidx = uidx_ref[...]  # (1, tile)
    iidx = iidx_ref[...]  # (1, tile)

    # Fused embedding gather: one-hot matmul on the MXU.
    # (D, V) @ (V, tile) -> (D, tile), accumulated in f32.  The one-hot picks
    # exactly one table column per batch element, so the gather is exact.
    u_onehot = (jax.lax.broadcasted_iota(jnp.int32, (n_users, tile), 0) == uidx
                ).astype(uembT_ref.dtype)
    i_onehot = (jax.lax.broadcasted_iota(jnp.int32, (n_items, tile), 0) == iidx
                ).astype(iembT_ref.dtype)
    user_e = jnp.dot(uembT_ref[...], u_onehot, preferred_element_type=jnp.float32)
    item_e = jnp.dot(iembT_ref[...], i_onehot, preferred_element_type=jnp.float32)

    # GMF elementwise product (VPU, f32), then the Linear(D -> 1) layer as a
    # broadcast multiply + sublane reduction (no MXU needed for N=1).
    prod = user_e * item_e                                   # (D, tile)
    w = w_ref[...].astype(jnp.float32)                       # (D, 1) lane-broadcast
    score = jnp.sum(prod * w, axis=0, keepdims=True)         # (1, tile)
    score = score + b_ref[0]                                 # SMEM scalar bias
    out_ref[...] = jax.nn.sigmoid(score).astype(out_ref.dtype)


def gmf_forward(user_entries, item_entries, user_emb, item_emb, w, b, *,
                tb=1024, io_dtype=jnp.bfloat16):
    """user_entries/item_entries: int (B,); returns sigmoid scores, f32 (B,)."""
    B = user_entries.shape[0]
    n_users, D = user_emb.shape
    n_items, D2 = item_emb.shape
    assert D == D2

    # Lane-dense batch tiling: tile is a multiple of 128.
    tile = _round_up(min(tb, _round_up(B, 128)), 128)
    if tile > 128 and _round_up(B, tile) // tile < 2:
        # Keep >= 2 grid steps when possible so v7x's 2 TensorCores both get work.
        tile = _round_up(tile // 2, 128)
    Bp = _round_up(B, tile)
    pad = Bp - B

    uidx = jnp.pad(user_entries.astype(jnp.int32), (0, pad)).reshape(1, Bp)
    iidx = jnp.pad(item_entries.astype(jnp.int32), (0, pad)).reshape(1, Bp)

    # Tables resident in VMEM, transposed to (D, V) (batch-on-lanes layout),
    # stored as bf16 by default to halve bytes; compute accumulates in f32.
    uT = user_emb.astype(io_dtype).T                  # (D, n_users)
    iT = item_emb.astype(io_dtype).T                  # (D, n_items)
    table_bytes = (uT.size + iT.size) * jnp.dtype(io_dtype).itemsize
    # TODO(synk): for tables too large to keep resident in VMEM, switch to a
    # manual DMA gather from an HBM (pl.ANY) ref instead of the one-hot matmul.
    assert table_bytes <= 8 * 1024 * 1024, "embedding tables too large for VMEM-resident path"

    w2 = jnp.asarray(w, jnp.float32).reshape(D, 1)
    b1 = jnp.asarray(b, jnp.float32).reshape(1)

    out = pl.pallas_call(
        gmf_kernel,
        out_shape=jax.ShapeDtypeStruct((1, Bp), jnp.float32),
        grid_spec=pltpu.PrefetchScalarGridSpec(
            num_scalar_prefetch=0,
            grid=(Bp // tile,),
            in_specs=[
                pl.BlockSpec((1, tile), lambda i: (0, i)),           # user indices
                pl.BlockSpec((1, tile), lambda i: (0, i)),           # item indices
                pl.BlockSpec((D, n_users), lambda i: (0, 0)),        # user table^T (resident)
                pl.BlockSpec((D, n_items), lambda i: (0, 0)),        # item table^T (resident)
                pl.BlockSpec((D, 1), lambda i: (0, 0)),              # linear weight column
                pl.BlockSpec(memory_space=pltpu.MemorySpace.SMEM),   # bias scalar
            ],
            out_specs=pl.BlockSpec((1, tile), lambda i: (0, i)),     # lane-dense scores
        ),
        compiler_params=pltpu.CompilerParams(
            dimension_semantics=("parallel",),
        ),
    )(uidx, iidx, uT, iT, w2, b1)

    return out[0, :B]


def init_params(key, user_count, item_count, latent_dim):
    k_u, k_i, k_w = jax.random.split(key, 3)
    # nn.Embedding init: normal(mean=0, std=0.01)
    user_emb = 0.01 * jax.random.normal(k_u, (user_count, latent_dim), jnp.float32)
    item_emb = 0.01 * jax.random.normal(k_i, (item_count, latent_dim), jnp.float32)
    # nn.Linear(latent_dim, 1) with xavier_normal_: std = sqrt(2 / (fan_in + fan_out))
    std = (2.0 / (latent_dim + 1)) ** 0.5
    w = std * jax.random.normal(k_w, (latent_dim, 1), jnp.float32)   # stored as weight^T
    b = jnp.zeros((1,), jnp.float32)
    return user_emb, item_emb, w, b


if __name__ == "__main__":
    user_count, item_count, latent_dim = 10, 20, 32
    batch = 16

    key = jax.random.PRNGKey(0)
    k_params, k_users, k_items = jax.random.split(key, 3)

    user_emb, item_emb, w, b = init_params(k_params, user_count, item_count, latent_dim)
    user_entries = jax.random.randint(k_users, (batch,), 0, user_count, jnp.int32)
    item_entries = jax.random.randint(k_items, (batch,), 0, item_count, jnp.int32)

    # Plain-JAX reference (f32).
    ref = jax.nn.sigmoid(
        (jnp.take(user_emb, user_entries, 0) * jnp.take(item_emb, item_entries, 0)) @ w + b
    )[:, 0]

    # Default fast path: bf16-resident tables.
    score = gmf_forward(user_entries, item_entries, user_emb, item_emb, w, b)
    score = jax.block_until_ready(score)
    assert score.shape == (batch,)
    assert jnp.allclose(score, ref, atol=5e-3), "bf16 path mismatch vs reference"

    # f32-table path (tighter tolerance).
    score_f32 = gmf_forward(user_entries, item_entries, user_emb, item_emb, w, b,
                            io_dtype=jnp.float32)
    score_f32 = jax.block_until_ready(score_f32)
    assert jnp.allclose(score_f32, ref, atol=1e-4), "f32 path mismatch vs reference"

    print("KERNEL_OK")
</pallas_src>

<mosaic_0001>
module attributes {stable_mosaic.version = 11 : i64} {
  func.func @gmf_kernel(%arg0: i32, %arg1: memref<1x128xi32, #tpu.memory_space<vmem>>, %arg2: memref<1x128xi32, #tpu.memory_space<vmem>>, %arg3: memref<32x10xbf16, #tpu.memory_space<vmem>>, %arg4: memref<32x20xbf16, #tpu.memory_space<vmem>>, %arg5: memref<32x1xf32, #tpu.memory_space<vmem>>, %arg6: memref<1xf32, #tpu.memory_space<smem>>, %arg7: memref<1x128xf32, #tpu.memory_space<vmem>>) attributes {dimension_semantics = [#tpu.dimension_semantics<parallel>], iteration_bounds = array<i64: 1>, scalar_prefetch = 0 : i64, scratch_operands = 0 : i64, tpu.core_type = #tpu.core_type<tc>, window_params = [{transform_indices = @transform_0, window_bounds = array<i64: 1, 128>}, {transform_indices = @transform_1, window_bounds = array<i64: 1, 128>}, {pipeline_mode = #tpu.pipeline_mode<synchronous>, transform_indices = @transform_2, window_bounds = array<i64: 32, 10>}, {pipeline_mode = #tpu.pipeline_mode<synchronous>, transform_indices = @transform_3, window_bounds = array<i64: 32, 20>}, {pipeline_mode = #tpu.pipeline_mode<synchronous>, transform_indices = @transform_4, window_bounds = array<i64: 32, 1>}, {transform_indices = @transform_5, window_bounds = array<i64: 1>}, {transform_indices = @transform_6, window_bounds = array<i64: 1, 128>}]} {
    %c0 = arith.constant 0 : index
    %c0_0 = arith.constant 0 : index
    %0 = vector.load %arg1[%c0, %c0_0] : memref<1x128xi32, #tpu.memory_space<vmem>>, vector<1x128xi32>
    %c0_1 = arith.constant 0 : index
    %c0_2 = arith.constant 0 : index
    %1 = vector.load %arg2[%c0_1, %c0_2] : memref<1x128xi32, #tpu.memory_space<vmem>>, vector<1x128xi32>
    %2 = tpu.iota {dimensions = array<i32: 0>} : vector<10x128xi32>
    %3 = vector.broadcast %0 : vector<1x128xi32> to vector<10x128xi32>
    %4 = arith.cmpi eq, %2, %3 : vector<10x128xi32>
    %5 = arith.extui %4 : vector<10x128xi1> to vector<10x128xi32>
    %6 = arith.sitofp %5 : vector<10x128xi32> to vector<10x128xf32>
    %7 = arith.truncf %6 : vector<10x128xf32> to vector<10x128xbf16>
    %8 = tpu.iota {dimensions = array<i32: 0>} : vector<20x128xi32>
    %9 = vector.broadcast %1 : vector<1x128xi32> to vector<20x128xi32>
    %10 = arith.cmpi eq, %8, %9 : vector<20x128xi32>
    %11 = arith.extui %10 : vector<20x128xi1> to vector<20x128xi32>
    %12 = arith.sitofp %11 : vector<20x128xi32> to vector<20x128xf32>
    %13 = arith.truncf %12 : vector<20x128xf32> to vector<20x128xbf16>
    %c0_3 = arith.constant 0 : index
    %c0_4 = arith.constant 0 : index
    %14 = vector.load %arg3[%c0_3, %c0_4] : memref<32x10xbf16, #tpu.memory_space<vmem>>, vector<32x10xbf16>
    %cst = arith.constant dense<0.000000e+00> : vector<32x128xf32>
    %15 = tpu.matmul %14, %7, %cst {dimension_numbers = #tpu.dot_dimension_numbers<[1], [0], [0], [1], [0, 0, 1, 1], [], []>} : vector<32x10xbf16>, vector<10x128xbf16>, vector<32x128xf32> -> vector<32x128xf32>
    %c0_5 = arith.constant 0 : index
    %c0_6 = arith.constant 0 : index
    %16 = vector.load %arg4[%c0_5, %c0_6] : memref<32x20xbf16, #tpu.memory_space<vmem>>, vector<32x20xbf16>
    %cst_7 = arith.constant dense<0.000000e+00> : vector<32x128xf32>
    %17 = tpu.matmul %16, %13, %cst_7 {dimension_numbers = #tpu.dot_dimension_numbers<[1], [0], [0], [1], [0, 0, 1, 1], [], []>} : vector<32x20xbf16>, vector<20x128xbf16>, vector<32x128xf32> -> vector<32x128xf32>
    %18 = arith.mulf %15, %17 : vector<32x128xf32>
    %c0_8 = arith.constant 0 : index
    %c0_9 = arith.constant 0 : index
    %19 = vector.load %arg5[%c0_8, %c0_9] : memref<32x1xf32, #tpu.memory_space<vmem>>, vector<32x1xf32>
    %20 = vector.broadcast %19 : vector<32x1xf32> to vector<32x128xf32>
    %21 = arith.mulf %18, %20 : vector<32x128xf32>
    %cst_10 = arith.constant dense<0.000000e+00> : vector<128xf32>
    %22 = vector.multi_reduction <add>, %21, %cst_10 [0] : vector<32x128xf32> to vector<128xf32>
    %23 = vector.shape_cast %22 : vector<128xf32> to vector<1x128xf32>
    %c0_11 = arith.constant 0 : index
    %24 = memref.load %arg6[%c0_11] : memref<1xf32, #tpu.memory_space<smem>>
    %25 = vector.broadcast %24 : f32 to vector<1x128xf32>
    %26 = arith.addf %23, %25 : vector<1x128xf32>
    %27 = arith.negf %26 : vector<1x128xf32>
    %28 = math.exp %27 : vector<1x128xf32>
    %cst_12 = arith.constant 1.000000e+00 : f32
    %29 = vector.broadcast %cst_12 : f32 to vector<1x128xf32>
    %30 = arith.addf %29, %28 : vector<1x128xf32>
    %31 = arith.divf %29, %30 : vector<1x128xf32>
    %c0_13 = arith.constant 0 : index
    %c0_14 = arith.constant 0 : index
    %32 = vector.load %arg7[%c0_13, %c0_14] : memref<1x128xf32, #tpu.memory_space<vmem>>, vector<1x128xf32>
    tpu.vector_store %arg7[%c0_13, %c0_14], %31 {strides = array<i32>} : memref<1x128xf32, #tpu.memory_space<vmem>>, vector<1x128xf32>,
    return
  }
  func.func @transform_0(%arg0: i32) -> (i32, i32) {
    %c0_i32 = arith.constant 0 : i32
    %c0_i32_0 = arith.constant 0 : i32
    return %c0_i32, %arg0 : i32, i32
  }
  func.func @transform_1(%arg0: i32) -> (i32, i32) {
    %c0_i32 = arith.constant 0 : i32
    %c0_i32_0 = arith.constant 0 : i32
    return %c0_i32, %arg0 : i32, i32
  }
  func.func @transform_2(%arg0: i32) -> (i32, i32) {
    %c0_i32 = arith.constant 0 : i32
    %c0_i32_0 = arith.constant 0 : i32
    %c0_i32_1 = arith.constant 0 : i32
    return %c0_i32, %c0_i32_0 : i32, i32
  }
  func.func @transform_3(%arg0: i32) -> (i32, i32) {
    %c0_i32 = arith.constant 0 : i32
    %c0_i32_0 = arith.constant 0 : i32
    %c0_i32_1 = arith.constant 0 : i32
    return %c0_i32, %c0_i32_0 : i32, i32
  }
  func.func @transform_4(%arg0: i32) -> (i32, i32) {
    %c0_i32 = arith.constant 0 : i32
    %c0_i32_0 = arith.constant 0 : i32
    %c0_i32_1 = arith.constant 0 : i32
    return %c0_i32, %c0_i32_0 : i32, i32
  }
  func.func @transform_5(%arg0: i32) -> i32 {
    %c0_i32 = arith.constant 0 : i32
    %c0_i32_0 = arith.constant 0 : i32
    return %c0_i32 : i32
  }
  func.func @transform_6(%arg0: i32) -> (i32, i32) {
    %c0_i32 = arith.constant 0 : i32
    %c0_i32_0 = arith.constant 0 : i32
    return %c0_i32, %arg0 : i32, i32
  }
}

</mosaic_0001>

<llo_original>
// kernel: tpu_custom_call.1
$region0: #{tpu_custom_call.1}
  #allocation0 [shape = 'u32[]', space=smem, size = 0x4, offset = 0x4, fixed_abs, tag = 'smem constant byte address 0x4 - core index']
  #allocation1 [shape = 'u32[144,128]{1,0:T(1,128)}', space=vmem, size = 0x12000, scoped, tag = 'internal scratch']
  #allocation2 [shape = 'f32[1]{0:T(128)S(6)}', space=smem, size = 0x200, scoped, tag = 'scoped memory for tpu_custom_call.1']
  %s0 = inlined_call_operand.vmem [shape: s32[1,128], index: 0, kind: input, shape index: {}]
  %s1 = inlined_call_operand.vmem [shape: s32[1,128], index: 1, kind: input, shape index: {}]
  %s2 = inlined_call_operand.vmem [shape: bf16[32,10], index: 2, kind: input, shape index: {}]
  %s3 = inlined_call_operand.vmem [shape: bf16[32,20], index: 3, kind: input, shape index: {}]
  %s4 = inlined_call_operand.vmem [shape: f32[32,1], index: 4, kind: input, shape index: {}]
  %s5 = inlined_call_operand.<no memory space> [shape: f32[1], index: 5, kind: input, shape index: {}]
  %s6 = inlined_call_operand.hbm [shape: f32[1,128], index: 6, kind: output, shape index: {}]
  %s7 = sld [smem:[#allocation0]]
  $region34: #{tpu_custom_call.1} parent=0
    _
  %s9 = ssub.s32 1, %s7
  %s10 = scalar_select 0, %s9, %s7
  %11 = sst [smem:[#allocation2]] %s5
  $region1: #{tpu_custom_call.1} parent=0
    #allocation3 [shape = 'u8[512]{0}', space=vmem, size = 0x400, scoped, tag = 'output window, operand 0, single buffered']
    #allocation4 [shape = 's32[1]{0}', space=sflag, size = 0x4, scoped, tag = 'scoped memory for tpu_custom_call.1']
    %12 = vsyncpa [#allocation4], 0
    // Predicated region
    $region2: #{tpu_custom_call.1} parent=1 // pred_check
      _
    $region3: #{tpu_custom_call.1} parent=1 // pred_check_branch
      %14 = sbr.rel (0) target = $region5
    $region4: #{tpu_custom_call.1} parent=1 // pred_region
      _
    $region5: #{tpu_custom_call.1} parent=1 // pred_fallthru
      _
    // Predicated region
    $region6: #{tpu_custom_call.1} parent=1 // pred_check
      _
    $region7: #{tpu_custom_call.1} parent=1 // pred_check_branch
      %16 = sbr.rel (0) target = $region9
    $region8: #{tpu_custom_call.1} parent=1 // pred_region
      _
    $region9: #{tpu_custom_call.1} parent=1 // pred_fallthru
      _
    // Predicated region
    $region10: #{tpu_custom_call.1} parent=1 // pred_check
      _
    $region11: #{tpu_custom_call.1} parent=1 // pred_check_branch
      %18 = sbr.rel (0) target = $region13
    $region12: #{tpu_custom_call.1} parent=1 // pred_region
      _
    $region13: #{tpu_custom_call.1} parent=1 // pred_fallthru
      _
    // Predicated region
    $region14: #{tpu_custom_call.1} parent=1 // pred_check
      _
    $region15: #{tpu_custom_call.1} parent=1 // pred_check_branch
      %20 = sbr.rel (0) target = $region17
    $region16: #{tpu_custom_call.1} parent=1 // pred_region
      _
    $region17: #{tpu_custom_call.1} parent=1 // pred_fallthru
      _
    // Predicated region
    $region18: #{tpu_custom_call.1} parent=1 // pred_check
      _
    $region19: #{tpu_custom_call.1} parent=1 // pred_check_branch
      %22 = sbr.rel (0) target = $region21
    $region20: #{tpu_custom_call.1} parent=1 // pred_region
      _
    $region21: #{tpu_custom_call.1} parent=1 // pred_fallthru
      _
    // Predicated region
    $region22: #{tpu_custom_call.1} parent=1 // pred_check
      _
    $region23: #{tpu_custom_call.1} parent=1 // pred_check_branch
      %24 = sbr.rel (0) target = $region25
    $region24: #{tpu_custom_call.1} parent=1 // pred_region
      _
    $region25: #{tpu_custom_call.1} parent=1 // pred_fallthru
      _
    %v26 = vld [vmem:[%s0] sm:$0x1]
    %v27 = vld [vmem:[%s1] sm:$0x1]
    %v28 = vlaneseq
    %v29 = vshrl.u32 %v28, 7
    %v30 = vadd.s32 %v29, 8
    %v31 = vlaneseq
    %v32 = vshrl.u32 %v31, 7
    %v33 = vsub.s32 0, %v32
    %v34 = vrot.slane %v26, %v33
    %vm35 = vcmp.eq.s32.totalorder %v29, %v34
    %vm36 = vcmp.eq.s32.totalorder %v30, %v34
    %v37 = vsel %vm35, 1, 0
    %v38 = vsel %vm36, 1, 0
    %v39 = vcvt.s32.f32 %v37
    %v40 = vcvt.s32.f32 %v38
    %v41 = vpack.c.bf16 %v40, %v39
    %v42 = vadd.s32 %v29, 16
    %v43 = vlaneseq
    %v44 = vshrl.u32 %v43, 7
    %v45 = vsub.s32 0, %v44
    %v46 = vrot.slane %v27, %v45
    %vm47 = vcmp.eq.s32.totalorder %v29, %v46
    %vm48 = vcmp.eq.s32.totalorder %v30, %v46
    %vm49 = vcmp.eq.s32.totalorder %v42, %v46
    %v50 = vsel %vm47, 1, 0
    %v51 = vsel %vm48, 1, 0
    %v52 = vsel %vm49, 1, 0
    %v53 = vcvt.s32.f32 %v50
    %v54 = vcvt.s32.f32 %v51
    %v55 = vcvt.s32.f32 %v52
    %v56 = vpack.c.bf16 %v54, %v53
    %v57 = vpack.c.bf16 %v55, %v55
    %v58 = vld [vmem:[%s2] sm:$0xf]
    %v59 = vld [vmem:[%s2 + $0x4] sm:$0xf]
    %v60 = vld [vmem:[%s2 + $0x8] sm:$0xf]
    %v61 = vld [vmem:[%s2 + $0xc] sm:$0xf]
    %v66 = vunpack.c.l.b16 %v58
    %v67 = vunpack.c.l.b16 %v59
    %v68 = vunpack.c.l.b16 %v60
    %v69 = vunpack.c.l.b16 %v61
    %v70 = vpack.c.b16 %v67, %v66
    %v71 = vpack.c.b16 %v69, %v68
    %vm72 = vcmask 80896
    %v74 = vsel %vm72, %v70, 0
    %v77 = vsel %vm72, %v71, 0
    %vm79 = vcmask 1044480
    %v81 = vsel %vm79, %v41, 0
    %83 = vmatprep.subr.bf16.mxu0 0
    %84 = vmatpush1.bf16.msra.mxu0 %v81
    %85 = vmatprep.subr.bf16.mxu0 0
    %86 = vmatpush1.bf16.msra.mxu0 0
    %87 = vmatprep.subr.bf16.mxu0 0
    %88 = vmatpush1.bf16.msra.mxu0 0
    %89 = vmatprep.subr.bf16.mxu0 0
    %90 = vmatpush1.bf16.msra.mxu0 0
    %91 = vmatprep.subr.bf16.mxu0 0
    %92 = vmatpush1.bf16.msra.mxu0 0
    %93 = vmatprep.subr.bf16.mxu0 0
    %94 = vmatpush1.bf16.msra.mxu0 0
    %95 = vmatprep.subr.bf16.mxu0 0
    %96 = vmatpush1.bf16.msra.mxu0 0
    %97 = vmatprep.subr.bf16.mxu0 0
    %98 = vmatpush1.bf16.msra.mxu0 0
    %99 = vmatprep.subr.bf16.mxu0 0
    %100 = vmatpush1.bf16.msra.mxu0 0
    %101 = vmatprep.subr.bf16.mxu0 0
    %102 = vmatpush1.bf16.msra.mxu0 0
    %103 = vmatprep.subr.bf16.mxu0 0
    %104 = vmatpush1.bf16.msra.mxu0 0
    %105 = vmatprep.subr.bf16.mxu0 0
    %106 = vmatpush1.bf16.msra.mxu0 0
    %107 = vmatprep.subr.bf16.mxu0 0
    %108 = vmatpush1.bf16.msra.mxu0 0
    %109 = vmatprep.subr.bf16.mxu0 0
    %110 = vmatpush1.bf16.msra.mxu0 0
    %111 = vmatprep.subr.bf16.mxu0 0
    %112 = vmatpush1.bf16.msra.mxu0 0
    %113 = vmatprep.subr.bf16.mxu0 0
    %114 = vmatpush1.bf16.msra.mxu0 0
    %115 = vmatprep.mubr.bf16.mxu0 0
    %116 = vmatmul.mubr.bf16.gmra.mrb[0].mxu0 %v74
    %v117 = vpop.f32.mrb[0].mxu0
    %v118 = vadd.f32 0.0, %v117
    %v119 = vpop.f32.mrb[0].mxu0
    %v120 = vpop.f32.mrb[0].mxu0
    %v121 = vadd.f32 0.0, %v120
    %v122 = vpop.f32.mrb[0].mxu0
    %123 = vmatprep.mubr.bf16.mxu0 0
    %124 = vmatmul.mubr.bf16.gmra.mrb[0].mxu0 %v77
    %v125 = vpop.f32.mrb[0].mxu0
    %v126 = vadd.f32 0.0, %v125
    %v127 = vpop.f32.mrb[0].mxu0
    %v128 = vpop.f32.mrb[0].mxu0
    %v129 = vadd.f32 0.0, %v128
    %v130 = vpop.f32.mrb[0].mxu0
    %131 = vdwg.mxu0
    %v132 = vld [vmem:[%s3] sm:$0xf]
    %v133 = vld [vmem:[%s3 + $0x4] sm:$0xf]
    %v134 = vld [vmem:[%s3 + $0x8] sm:$0xf]
    %v135 = vld [vmem:[%s3 + $0xc] sm:$0xf]
    %v140 = vunpack.c.l.b16 %v132
    %v141 = vunpack.c.l.b16 %v133
    %v142 = vunpack.c.l.b16 %v134
    %v143 = vunpack.c.l.b16 %v135
    %v144 = vpack.c.b16 %v141, %v140
    %v145 = vpack.c.b16 %v143, %v142
    %vm146 = vcmask 162816
    %v148 = vsel %vm146, %v144, 0
    %v151 = vsel %vm146, %v145, 0
    %vm153 = vcmask 1041408
    %v155 = vsel %vm153, %v57, 0
    %157 = vmatprep.subr.bf16.mxu0 0
    %158 = vmatpush1.bf16.msra.mxu0 %v56
    %159 = vmatprep.subr.bf16.mxu0 0
    %160 = vmatpush1.bf16.msra.mxu0 %v155
    %161 = vmatprep.subr.bf16.mxu0 0
    %162 = vmatpush1.bf16.msra.mxu0 0
    %163 = vmatprep.subr.bf16.mxu0 0
    %164 = vmatpush1.bf16.msra.mxu0 0
    %165 = vmatprep.subr.bf16.mxu0 0
    %166 = vmatpush1.bf16.msra.mxu0 0
    %167 = vmatprep.subr.bf16.mxu0 0
    %168 = vmatpush1.bf16.msra.mxu0 0
    %169 = vmatprep.subr.bf16.mxu0 0
    %170 = vmatpush1.bf16.msra.mxu0 0
    %171 = vmatprep.subr.bf16.mxu0 0
    %172 = vmatpush1.bf16.msra.mxu0 0
    %173 = vmatprep.subr.bf16.mxu0 0
    %174 = vmatpush1.bf16.msra.mxu0 0
    %175 = vmatprep.subr.bf16.mxu0 0
    %176 = vmatpush1.bf16.msra.mxu0 0
    %177 = vmatprep.subr.bf16.mxu0 0
    %178 = vmatpush1.bf16.msra.mxu0 0
    %179 = vmatprep.subr.bf16.mxu0 0
    %180 = vmatpush1.bf16.msra.mxu0 0
    %181 = vmatprep.subr.bf16.mxu0 0
    %182 = vmatpush1.bf16.msra.mxu0 0
    %183 = vmatprep.subr.bf16.mxu0 0
    %184 = vmatpush1.bf16.msra.mxu0 0
    %185 = vmatprep.subr.bf16.mxu0 0
    %186 = vmatpush1.bf16.msra.mxu0 0
    %187 = vmatprep.subr.bf16.mxu0 0
    %188 = vmatpush1.bf16.msra.mxu0 0
    %189 = vmatprep.mubr.bf16.mxu0 0
    %190 = vmatmul.mubr.bf16.gmra.mrb[0].mxu0 %v148
    %v191 = vpop.f32.mrb[0].mxu0
    %v192 = vadd.f32 0.0, %v191
    %v193 = vpop.f32.mrb[0].mxu0
    %v194 = vpop.f32.mrb[0].mxu0
    %v195 = vadd.f32 0.0, %v194
    %v196 = vpop.f32.mrb[0].mxu0
    %197 = vmatprep.mubr.bf16.mxu0 0
    %198 = vmatmul.mubr.bf16.gmra.mrb[0].mxu0 %v151
    %v199 = vpop.f32.mrb[0].mxu0
    %v200 = vadd.f32 0.0, %v199
    %v201 = vpop.f32.mrb[0].mxu0
    %v202 = vpop.f32.mrb[0].mxu0
    %v203 = vadd.f32 0.0, %v202
    %v204 = vpop.f32.mrb[0].mxu0
    %205 = vdwg.mxu0
    %v206 = vmul.f32 %v118, %v192
    %v207 = vmul.f32 %v121, %v195
    %v208 = vmul.f32 %v126, %v200
    %v209 = vmul.f32 %v129, %v203
    %v210 = vld [vmem:[%s4] sm:$0xff]
    %v211 = vld [vmem:[%s4 + $0x8] sm:$0xff]
    %v212 = vld [vmem:[%s4 + $0x10] sm:$0xff]
    %v213 = vld [vmem:[%s4 + $0x18] sm:$0xff]
    %215 = vset.pattern.permute.xlu0 0
    %216 = vperm.xlu0 %215, %v210
    %v217 = vpop.permute.xlu0 %216
    %220 = vset.pattern.permute.xlu0 0
    %221 = vperm.xlu0 %220, %v211
    %v222 = vpop.permute.xlu0 %221
    %225 = vset.pattern.permute.xlu0 0
    %226 = vperm.xlu0 %225, %v212
    %v227 = vpop.permute.xlu0 %226
    %230 = vset.pattern.permute.xlu0 0
    %231 = vperm.xlu0 %230, %v213
    %v232 = vpop.permute.xlu0 %231
    %v234 = vmul.f32 %v206, %v217
    %v235 = vmul.f32 %v207, %v222
    %v236 = vmul.f32 %v208, %v227
    %v237 = vmul.f32 %v209, %v232
    %v238 = vadd.f32 %v234, %v235
    %v239 = vadd.f32 %v238, %v236
    %v240 = vadd.f32 %v239, %v237
    %v241 = vrot.slane %v240, 4
    %v242 = vadd.f32 %v240, %v241
    %v243 = vrot.slane %v242, 2
    %v244 = vadd.f32 %v242, %v243
    %v245 = vrot.slane %v244, 1
    %v246 = vadd.f32 %v244, %v245
    %s247 = sld [smem:[#allocation2]]
    %v248 = vstv %s247
    %v249 = vadd.f32 %v246, %v248
    %v250 = vxor.u32 %v249, 2147483648
    %v251 = vmul.f32 %v250, 1.442695
    %v252 = vpow.pop %v251
    %v253 = vadd.f32 %v252, 1.0
    %v254 = vrcp.pop %v253
    %v255 = vmul.f32 1.0, %v254
    %256 = vst [vmem:[#allocation3] sm:$0x1] %v255
    // Predicated region
    $region26: #{tpu_custom_call.1} parent=1 // pred_check
      _
    $region27: #{tpu_custom_call.1} parent=1 // pred_check_branch
      %258 = sbr.rel (0) target = $region29
    $region28: #{tpu_custom_call.1} parent=1 // pred_region
      %s260 = ssub.s32 16, 16
      %261 = vsyncadd [#allocation4], %s260
      %s263 = sshll.u32 [#allocation3], 4
      %s264 = int_to_ptr.vmem [resolvable:$true] %s263
      %266 = dma.vmem_to_hbm [thread:$0]  %s264, 16, %s6, [#allocation4]
    $region29: #{tpu_custom_call.1} parent=1 // pred_fallthru
      _
    // Predicated region
    $region30: #{tpu_custom_call.1} parent=1 // pred_check
      _
    $region31: #{tpu_custom_call.1} parent=1 // pred_check_branch
      %268 = sbr.rel (0) target = $region33
    $region32: #{tpu_custom_call.1} parent=1 // pred_region
      %269 = dma.done [#allocation4], 16
    $region33: #{tpu_custom_call.1} parent=1 // pred_fallthru
      _
    %270 = vsyncpa [#allocation4], 1

</llo_original>
